<compile_context>
chip_gen: v5e
topology: v5e:2x2
jax: 0.10.0
libtpu: 0.0.40
codegen_flags: <defaults>
</compile_context>

<pallas_src>
import math

import jax
import jax.numpy as jnp
from jax import lax
from jax.experimental import pallas as pl
from jax.experimental.pallas import tpu as pltpu


def _lrstate_kernel(eff_ref, q_ref, k_ref, o_ref):
    """One (batch, head, q-tile) step of scores = (q * eff_h) @ k^T.

    eff_ref: (h,)      f32 SMEM (scalar prefetch): scale * clamp(exp(-softplus(gamma_h))).
    q_ref:   (TQ, d_k) VMEM query tile for the current (batch, head, q-tile).
    k_ref:   (S,  d_k) VMEM key block for the current (batch, head); resident across qi.
    o_ref:   (TQ, S)   VMEM output tile.
    """
    hh = pl.program_id(1)
    q = q_ref[...] * eff_ref[hh]                      # fold decay+scale into small q tile
    s = lax.dot_general(                              # q @ k^T on the MXU (contract last axes)
        q, k_ref[...],
        dimension_numbers=(((1,), (1,)), ((), ())),
        preferred_element_type=jnp.float32,
        precision=lax.Precision.HIGHEST,              # fp32-faithful; store-bound, compute slack
    )
    o_ref[...] = s.astype(o_ref.dtype)


def _choose_q_tile(seqlen, d_k, in_itemsize, out_itemsize, budget_bytes,
                   k_buffers=2, tq_unit=256):
    """Largest query tile whose pipelined VMEM footprint fits `budget_bytes`.

    Footprint = k_buffers * (S, d_k) K block        (resident across the q-tile loop)
              + 2 * (TQ, d_k) Q block               (double-buffered)
              + 2 * (TQ, S)   out block             (double-buffered).
    """
    if seqlen <= tq_unit:
        return seqlen                                 # single q block; trivially fits
    avail = budget_bytes - k_buffers * seqlen * d_k * in_itemsize
    per_row = 2 * seqlen * out_itemsize + 2 * d_k * in_itemsize
    tq_max = max(0, avail) // per_row
    if tq_max >= seqlen:
        return seqlen                                 # the whole (S, S) slab fits
    tq = (tq_max // tq_unit) * tq_unit                # 256-row tiles fill the 2x256^2 MXU M dim
    if tq == 0:
        tq = max(8, (tq_max // 8) * 8)                # VMEM-starved corner; keep sublane-aligned
    return tq


def lr_state_forward(query, key, gammas, n_heads, *, out_dtype=jnp.float32,
                     use_pallas=None):
    """query, key: (bs, S, d_model) f32; gammas: (n_heads, 1, 1) f32.

    Returns scores of shape (bs, n_heads, S, S), matching LrState.forward with
    peek_cur=False and state_weight=None.
    """
    bs, seqlen, d_model = query.shape
    h = n_heads
    d_k = d_model // h
    scale = 1.0 / math.sqrt(d_model)  # PyTorch divides by sqrt(query.size(2)) == d_model

    # Per-head factor, clamp applied BEFORE folding the scale (matches PyTorch order).
    eff = (jnp.clip(jnp.exp(-jax.nn.softplus(gammas.reshape(h))), 1e-5, 1e5)
           * scale).astype(jnp.float32)

    if use_pallas is None:
        # Tiny sequences: output tiles are lane-sparse (masked vst) and per-step
        # overhead dominates a degenerate matmul -> plain XLA is faster.
        use_pallas = seqlen >= 128
    if not use_pallas:
        q = query.reshape(bs, seqlen, h, d_k).transpose(0, 2, 1, 3)
        k = key.reshape(bs, seqlen, h, d_k).transpose(0, 2, 1, 3)
        scores = jnp.einsum("bhqd,bhkd->bhqk", q, k,
                            precision=lax.Precision.HIGHEST)
        return (scores * eff[None, :, None, None]).astype(out_dtype)

    # --- VMEM budget (generation-aware: ~96 MiB on v5e/v6e, ~48 MiB on v7x) ---
    try:
        info = pltpu.get_tpu_info()
        vmem_cap = getattr(info, "vmem_capacity_bytes", 128 * 1024 * 1024)
    except Exception:  # pragma: no cover - conservative fallback
        vmem_cap = 128 * 1024 * 1024
    vmem_limit = int(vmem_cap * 3 // 4)
    tile_budget = vmem_limit - (2 << 20)              # headroom for internal scratch

    in_itemsize = query.dtype.itemsize
    out_itemsize = jnp.dtype(out_dtype).itemsize

    # Single-buffer the resident K block when it is large: it only changes once per
    # nq inner steps, and the saved VMEM buys a larger q tile (matters on v7x).
    k_block_bytes = seqlen * d_k * in_itemsize
    k_single_buffer = k_block_bytes >= (4 << 20)
    k_buffers = 1 if k_single_buffer else 2
    k_kwargs = {"pipeline_mode": pl.Buffered(1)} if k_single_buffer else {}

    tq = _choose_q_tile(seqlen, d_k, in_itemsize, out_itemsize, tile_budget,
                        k_buffers=k_buffers)
    nq = pl.cdiv(seqlen, tq)                          # ragged last block is masked by Pallas
    grid = (bs, h, nq)

    out_shape = jax.ShapeDtypeStruct((bs, h, seqlen, seqlen), out_dtype)
    out_spec = pl.BlockSpec(
        (None, None, tq, seqlen), lambda b, hh, qi, eff_r: (b, hh, qi, 0)
    )

    if d_k % 128 == 0:
        # Slice each head straight out of the d_model axis: avoids two full
        # HBM read+write transpose passes over q and k in the wrapper.
        q_in, k_in = query, key
        q_spec = pl.BlockSpec(
            (None, tq, d_k), lambda b, hh, qi, eff_r: (b, qi, hh)
        )
        k_spec = pl.BlockSpec(
            (None, seqlen, d_k), lambda b, hh, qi, eff_r: (b, 0, hh), **k_kwargs
        )
    else:
        # Transpose path (required when d_k violates the 128-lane block constraint).
        q_in = query.reshape(bs, seqlen, h, d_k).transpose(0, 2, 1, 3)
        k_in = key.reshape(bs, seqlen, h, d_k).transpose(0, 2, 1, 3)
        q_spec = pl.BlockSpec(
            (None, None, tq, d_k), lambda b, hh, qi, eff_r: (b, hh, qi, 0)
        )
        k_spec = pl.BlockSpec(
            (None, None, seqlen, d_k),
            lambda b, hh, qi, eff_r: (b, hh, 0, 0), **k_kwargs
        )

    return pl.pallas_call(
        _lrstate_kernel,
        out_shape=out_shape,
        grid_spec=pltpu.PrefetchScalarGridSpec(
            num_scalar_prefetch=1,
            grid=grid,
            in_specs=[q_spec, k_spec],
            out_specs=out_spec,
        ),
        compiler_params=pltpu.CompilerParams(
            # (b, h) parallel -> megacore splits over batch*heads (keeps K resident
            # per core); qi "arbitrary" -> each core sweeps its own q tiles.
            dimension_semantics=("parallel", "parallel", "arbitrary"),
            vmem_limit_bytes=vmem_limit,
        ),
    )(eff, q_in, k_in)


def _reference(query, key, gammas, n_heads):
    bs, seqlen, d_model = query.shape
    d_k = d_model // n_heads
    q = query.reshape(bs, seqlen, n_heads, d_k).transpose(0, 2, 1, 3)
    k = key.reshape(bs, seqlen, n_heads, d_k).transpose(0, 2, 1, 3)
    scores = jnp.einsum("bhqd,bhkd->bhqk", q, k,
                        precision=lax.Precision.HIGHEST) / math.sqrt(d_model)
    total_effect = jnp.clip(jnp.exp(-jax.nn.softplus(gammas))[None], 1e-5, 1e5)
    return scores * total_effect


if __name__ == "__main__":
    # Small shapes consistent with the module: d_model=32, n_heads=4, seq=8, batch=2.
    bs, seqlen, d_model, n_heads = 2, 8, 32, 4

    rng = jax.random.PRNGKey(0)
    k1, k2, k3 = jax.random.split(rng, 3)

    query = jax.random.normal(k1, (bs, seqlen, d_model), dtype=jnp.float32)
    key_t = jax.random.normal(k2, (bs, seqlen, d_model), dtype=jnp.float32)

    # Deterministic xavier_uniform-style init for gammas (n_heads, 1, 1):
    # fan_in = 1, fan_out = n_heads  ->  bound = sqrt(6 / (1 + n_heads)).
    bound = math.sqrt(6.0 / (1.0 + n_heads))
    gammas = jax.random.uniform(
        k3, (n_heads, 1, 1), dtype=jnp.float32, minval=-bound, maxval=bound
    )

    ref = _reference(query, key_t, gammas, n_heads)

    # 1) Force the Pallas kernel even at this tiny shape (exercise the kernel path).
    out = jax.block_until_ready(
        lr_state_forward(query, key_t, gammas, n_heads, use_pallas=True))
    assert out.shape == (bs, n_heads, seqlen, seqlen)
    assert jnp.allclose(out, ref, atol=1e-5, rtol=1e-5), "pallas f32 mismatch"

    # 2) bf16 score output (store-bound kernel: halves HBM write traffic).
    out_bf16 = jax.block_until_ready(
        lr_state_forward(query, key_t, gammas, n_heads,
                         out_dtype=jnp.bfloat16, use_pallas=True))
    assert jnp.allclose(out_bf16.astype(jnp.float32), ref, atol=2e-2, rtol=2e-2), \
        "pallas bf16 mismatch"

    # 3) Auto path (tiny S -> XLA einsum fallback) must also match.
    out_auto = jax.block_until_ready(lr_state_forward(query, key_t, gammas, n_heads))
    assert jnp.allclose(out_auto, ref, atol=1e-5, rtol=1e-5), "fallback mismatch"

    # 4) Head-slicing path (d_k multiple of 128): bs=1, S=256, d_model=256, h=2.
    q2 = jax.random.normal(jax.random.PRNGKey(1), (1, 256, 256), dtype=jnp.float32)
    kk2 = jax.random.normal(jax.random.PRNGKey(2), (1, 256, 256), dtype=jnp.float32)
    g2 = jax.random.uniform(jax.random.PRNGKey(3), (2, 1, 1), dtype=jnp.float32,
                            minval=-1.0, maxval=1.0)
    out2 = jax.block_until_ready(lr_state_forward(q2, kk2, g2, 2))
    ref2 = _reference(q2, kk2, g2, 2)
    assert out2.shape == (1, 2, 256, 256)
    assert jnp.allclose(out2, ref2, atol=1e-4, rtol=1e-4), "head-slice path mismatch"

    print("KERNEL_OK")
</pallas_src>

<mosaic_0001>
module attributes {stable_mosaic.version = 11 : i64} {
  func.func @_lrstate_kernel(%arg0: i32, %arg1: i32, %arg2: i32, %arg3: memref<4xf32, #tpu.memory_space<smem>>, %arg4: memref<1x1x8x8xf32, #tpu.memory_space<vmem>>, %arg5: memref<1x1x8x8xf32, #tpu.memory_space<vmem>>, %arg6: memref<1x1x8x8xf32, #tpu.memory_space<vmem>>) attributes {dimension_semantics = [#tpu.dimension_semantics<parallel>, #tpu.dimension_semantics<parallel>, #tpu.dimension_semantics<arbitrary>], iteration_bounds = array<i64: 2, 4, 1>, scalar_prefetch = 1 : i64, scratch_operands = 0 : i64, tpu.core_type = #tpu.core_type<tc>, window_params = [{transform_indices = @transform_0, window_bounds = array<i64: 1, 1, 8, 8>}, {transform_indices = @transform_1, window_bounds = array<i64: 1, 1, 8, 8>}, {transform_indices = @transform_2, window_bounds = array<i64: 1, 1, 8, 8>}]} {
    %c0 = arith.constant 0 : index
    %c0_0 = arith.constant 0 : index
    %c0_1 = arith.constant 0 : index
    %c0_2 = arith.constant 0 : index
    %0 = vector.load %arg4[%c0, %c0_0, %c0_1, %c0_2] : memref<1x1x8x8xf32, #tpu.memory_space<vmem>>, vector<1x1x8x8xf32>
    %1 = vector.shape_cast %0 : vector<1x1x8x8xf32> to vector<8x8xf32>
    %2 = arith.index_cast %arg1 : i32 to index
    %3 = memref.load %arg3[%2] : memref<4xf32, #tpu.memory_space<smem>>
    %4 = vector.broadcast %3 : f32 to vector<8x8xf32>
    %5 = arith.mulf %1, %4 : vector<8x8xf32>
    %c0_3 = arith.constant 0 : index
    %c0_4 = arith.constant 0 : index
    %c0_5 = arith.constant 0 : index
    %c0_6 = arith.constant 0 : index
    %6 = vector.load %arg5[%c0_3, %c0_4, %c0_5, %c0_6] : memref<1x1x8x8xf32, #tpu.memory_space<vmem>>, vector<1x1x8x8xf32>
    %7 = vector.shape_cast %6 : vector<1x1x8x8xf32> to vector<8x8xf32>
    %cst = arith.constant dense<0.000000e+00> : vector<8x8xf32>
    %8 = tpu.matmul %5, %7, %cst {dimension_numbers = #tpu.dot_dimension_numbers<[1], [1], [0], [0], [0, 0, 1, 0], [], []>, precision = #tpu.contract_precision<fp32>} : vector<8x8xf32>, vector<8x8xf32>, vector<8x8xf32> -> vector<8x8xf32>
    %c0_7 = arith.constant 0 : index
    %c0_8 = arith.constant 0 : index
    %c0_9 = arith.constant 0 : index
    %c0_10 = arith.constant 0 : index
    %9 = vector.load %arg6[%c0_7, %c0_8, %c0_9, %c0_10] : memref<1x1x8x8xf32, #tpu.memory_space<vmem>>, vector<1x1x8x8xf32>
    %10 = vector.shape_cast %9 : vector<1x1x8x8xf32> to vector<8x8xf32>
    %11 = vector.shape_cast %8 : vector<8x8xf32> to vector<1x1x8x8xf32>
    tpu.vector_store %arg6[%c0_7, %c0_8, %c0_9, %c0_10], %11 {strides = array<i32>} : memref<1x1x8x8xf32, #tpu.memory_space<vmem>>, vector<1x1x8x8xf32>,
    return
  }
  func.func @transform_0(%arg0: i32, %arg1: i32, %arg2: i32, %arg3: memref<4xf32, #tpu.memory_space<smem>>) -> (i32, i32, i32, i32) {
    %c0_i32 = arith.constant 0 : i32
    %c0_i32_0 = arith.constant 0 : i32
    return %arg0, %arg1, %arg2, %c0_i32 : i32, i32, i32, i32
  }
  func.func @transform_1(%arg0: i32, %arg1: i32, %arg2: i32, %arg3: memref<4xf32, #tpu.memory_space<smem>>) -> (i32, i32, i32, i32) {
    %c0_i32 = arith.constant 0 : i32
    %c0_i32_0 = arith.constant 0 : i32
    %c0_i32_1 = arith.constant 0 : i32
    return %arg0, %arg1, %c0_i32, %c0_i32_0 : i32, i32, i32, i32
  }
  func.func @transform_2(%arg0: i32, %arg1: i32, %arg2: i32, %arg3: memref<4xf32, #tpu.memory_space<smem>>) -> (i32, i32, i32, i32) {
    %c0_i32 = arith.constant 0 : i32
    %c0_i32_0 = arith.constant 0 : i32
    return %arg0, %arg1, %arg2, %c0_i32 : i32, i32, i32, i32
  }
}

</mosaic_0001>

<llo_original>
// kernel: tpu_custom_call.1
$region0: #{tpu_custom_call.1}
  #allocation0 [shape = 'u32[]', space=smem, size = 0x4, offset = 0x4, fixed_abs, tag = 'smem constant byte address 0x4 - core index']
  #allocation1 [shape = 'u32[72,128]{1,0:T(1,128)}', space=vmem, size = 0x9000, scoped, tag = 'internal scratch']
  #allocation2 [shape = 's32[1]{0}', space=sflag, size = 0x4, scoped, tag = 'scoped memory for tpu_custom_call.1']
  #allocation3 [shape = 'u8[512]{0}', space=smem, size = 0x200, scoped, tag = 'prefetched SMEM operand 0']
  %s0 = inlined_call_operand.hbm [shape: f32[4], index: 0, kind: input, shape index: {}]
  %s1 = inlined_call_operand.hbm [shape: f32[2,4,8,8], index: 1, kind: input, shape index: {}]
  %s2 = inlined_call_operand.hbm [shape: f32[2,4,8,8], index: 2, kind: input, shape index: {}]
  %s3 = inlined_call_operand.hbm [shape: f32[2,4,8,8], index: 3, kind: output, shape index: {}]
  %s4 = sld [smem:[#allocation0]]
  $region49: #{tpu_custom_call.1} parent=0
    _
  %s6 = ssub.s32 1, %s4
  %s7 = scalar_select 0, %s6, %s4
  %s9 = sshll.u32 %s0, 4
  %s10 = int_to_ptr.hbm [resolvable:$true] %s9
  %12 = dma.hbm_to_smem %s10, 16, [#allocation3], [#allocation2]
  %14 = dma.done [#allocation2], 16
  %15 = sfence
  $region1: #{tpu_custom_call.1} parent=0
    #allocation4 [shape = 'u8[8192]{0}', space=vmem, size = 0x2000, scoped, tag = 'input window, operand 1']
    #allocation5 [shape = 's32[2]{0}', space=sflag, size = 0x8, scoped, tag = 'scoped memory for tpu_custom_call.1']
    #allocation6 [shape = 's32[2]{0}', space=sflag, size = 0x8, scoped, tag = 'scoped memory for tpu_custom_call.1']
    #allocation7 [shape = 'u8[8192]{0}', space=vmem, size = 0x2000, scoped, tag = 'input window, operand 2']
    #allocation8 [shape = 's32[2]{0}', space=sflag, size = 0x8, scoped, tag = 'scoped memory for tpu_custom_call.1']
    #allocation9 [shape = 'u8[8192]{0}', space=vmem, size = 0x2000, scoped, tag = 'output window, operand 0']
    %16 = vsyncpa [#allocation5], 0
    %s17 = scalar_lea.sflag [#allocation5], 1
    %18 = vsyncpa %s17, 0
    %19 = vsyncpa [#allocation8], 0
    %s20 = scalar_lea.sflag [#allocation8], 1
    %21 = vsyncpa %s20, 0
    %22 = vsyncpa [#allocation6], 0
    %s23 = scalar_lea.sflag [#allocation6], 1
    %24 = vsyncpa %s23, 0
    loop: start=0, step=1, limit=10
    $region2: #{tpu_custom_call.1} parent=1 // loop_pre_header
      _
    $region3: #{tpu_custom_call.1} parent=1 // loop_header
      %s26 = sphi 0, %s30
      %p27 = scmp.ge.s32.totalorder %s26, 10
      %s33 = sphi 0, %s52
      %s34 = sphi 0, %s48
      %s35 = sphi 0, %s44
      %s36 = sphi 0, %s33
      %s37 = sphi 0, %s34
      %s38 = sphi 0, %s35
      %s39 = sphi 0, %s36
      %s40 = sphi 0, %s37
      %s41 = sphi 0, %s38
      %s59 = sphi 0, %s61
      %s62 = sphi 0, %s59
      %s63 = sphi 0, %s62
      %s79 = sphi 0, %s63
      %s87 = sphi 0, %s89
      %s90 = sphi 0, %s87
      %s91 = sphi 0, %s90
      %s107 = sphi 0, %s91
      %s117 = sphi 0, %s119
      %s120 = sphi 0, %s117
      %s121 = sphi 0, %s120
      %s137 = sphi 0, %s121
    $region4: #{tpu_custom_call.1} parent=1 // loop_header_branch
      %29 = sbr.rel (%p27) target = $region8
    $region5: #{tpu_custom_call.1} parent=1 // loop_body
      %s31 = ssub.s32 %s26, 1
      %s32 = ssub.s32 %s26, 2
      %s42 = sadd.s32 1, %s35
      %p43 = scmp.ge.s32.totalorder %s42, 1
      %s44 = scalar_select %p43, 0, %s42
      %s45 = sadd.s32 1, %s34
      %s46 = scalar_select %p43, %s45, %s34
      %p47 = scmp.ge.s32.totalorder %s46, 4
      %s48 = scalar_select %p47, 0, %s46
      %s49 = sadd.s32 1, %s33
      %s50 = scalar_select %p47, %s49, %s33
      %p51 = scmp.ge.s32.totalorder %s50, 2
      %s52 = scalar_select %p51, 0, %s50
      %s53 = ssub.s32 %s33, %s52
      %s54 = ssub.s32 %s34, %s48
      %s55 = sor.u32 %s53, %s54
      %s56 = ssub.s32 %s35, %s44
      %s57 = sor.u32 %s55, %s56
      %p58 = scmp.eq.s32.totalorder %s57, 0
      %s60 = sadd.s32 %s59, 1
      %s61 = scalar_select %p58, %s59, %s60
      %p64 = pneg %p58
      %p65 = scmp.eq.s32.totalorder %s26, 7
      %p66 = por %p64, %p65
      %p67 = scmp.ne.s32.totalorder %s59, %s62
      %p68 = scmp.eq.s32.totalorder %s26, 0
      %p69 = por %p67, %p68
      %p70 = scmp.ne.s32.totalorder %s59, %s62
      %p71 = scmp.eq.s32.totalorder %s31, 7
      %p72 = por %p70, %p71
      %p73 = scmp.ne.s32.totalorder %s62, %s63
      %p74 = scmp.eq.s32.totalorder %s31, 0
      %p75 = por %p73, %p74
      %p76 = scmp.ne.s32.totalorder %s62, %s63
      %p77 = scmp.eq.s32.totalorder %s32, 7
      %p78 = por %p76, %p77
      %p80 = scmp.ne.s32.totalorder %s63, %s79
      %p81 = scmp.eq.s32.totalorder %s32, 0
      %p82 = por %p80, %p81
      %s83 = ssub.s32 %s33, %s52
      %s84 = ssub.s32 %s34, %s48
      %s85 = sor.u32 %s83, %s84
      %p86 = scmp.eq.s32.totalorder %s85, 0
      %s88 = sadd.s32 %s87, 1
      %s89 = scalar_select %p86, %s87, %s88
      %p92 = pneg %p86
      %p93 = scmp.eq.s32.totalorder %s26, 7
      %p94 = por %p92, %p93
      %p95 = scmp.ne.s32.totalorder %s87, %s90
      %p96 = scmp.eq.s32.totalorder %s26, 0
      %p97 = por %p95, %p96
      %p98 = scmp.ne.s32.totalorder %s87, %s90
      %p99 = scmp.eq.s32.totalorder %s31, 7
      %p100 = por %p98, %p99
      %p101 = scmp.ne.s32.totalorder %s90, %s91
      %p102 = scmp.eq.s32.totalorder %s31, 0
      %p103 = por %p101, %p102
      %p104 = scmp.ne.s32.totalorder %s90, %s91
      %p105 = scmp.eq.s32.totalorder %s32, 7
      %p106 = por %p104, %p105
      %p108 = scmp.ne.s32.totalorder %s91, %s107
      %p109 = scmp.eq.s32.totalorder %s32, 0
      %p110 = por %p108, %p109
      %s111 = ssub.s32 %s33, %s52
      %s112 = ssub.s32 %s34, %s48
      %s113 = sor.u32 %s111, %s112
      %s114 = ssub.s32 %s35, %s44
      %s115 = sor.u32 %s113, %s114
      %p116 = scmp.eq.s32.totalorder %s115, 0
      %s118 = sadd.s32 %s117, 1
      %s119 = scalar_select %p116, %s117, %s118
      %p122 = pneg %p116
      %p123 = scmp.eq.s32.totalorder %s26, 7
      %p124 = por %p122, %p123
      %p125 = scmp.ne.s32.totalorder %s117, %s120
      %p126 = scmp.eq.s32.totalorder %s26, 0
      %p127 = por %p125, %p126
      %p128 = scmp.ne.s32.totalorder %s117, %s120
      %p129 = scmp.eq.s32.totalorder %s31, 7
      %p130 = por %p128, %p129
      %p131 = scmp.ne.s32.totalorder %s120, %s121
      %p132 = scmp.eq.s32.totalorder %s31, 0
      %p133 = por %p131, %p132
      %p134 = scmp.ne.s32.totalorder %s120, %s121
      %p135 = scmp.eq.s32.totalorder %s32, 7
      %p136 = por %p134, %p135
      %p138 = scmp.ne.s32.totalorder %s121, %s137
      %p139 = scmp.eq.s32.totalorder %s32, 0
      %p140 = por %p138, %p139
      %p141 = scmp.le.s32.totalorder 1, %s26
      %p142 = scmp.lt.s32.totalorder %s26, 9
      %p143 = pnand %p141, %p142
      %p144 = pneg %p143
      // Predicated region
      $region9: #{tpu_custom_call.1} parent=5 // pred_check
        _
      $region10: #{tpu_custom_call.1} parent=5 // pred_check_branch
        %146 = sbr.rel (%p143) target = $region12
      $region11: #{tpu_custom_call.1} parent=5 // pred_region
        %s147 = ssub.s32 %s26, 1
      $region12: #{tpu_custom_call.1} parent=5 // pred_fallthru
        _
      %p148 = scmp.lt.s32.totalorder %s26, 8
      // Predicated region
      $region13: #{tpu_custom_call.1} parent=5 // pred_check
        %p149 = pneg %p148
      $region14: #{tpu_custom_call.1} parent=5 // pred_check_branch
        %151 = sbr.rel (%p149) target = $region16
      $region15: #{tpu_custom_call.1} parent=5 // pred_region
        // Predicated region
        $region17: #{tpu_custom_call.1} parent=15 // pred_check
          %p152 = pneg %p69
        $region18: #{tpu_custom_call.1} parent=15 // pred_check_branch
          %154 = sbr.rel (%p152) target = $region20
        $region19: #{tpu_custom_call.1} parent=15 // pred_region
          %s155 = sand.u32 %s59, 1
          %s156 = scalar_lea.sflag [#allocation5], %s155
          %s157 = sand.u32 %s59, 1
          %s158 = smul.addr %s157, 8
          %s159 = scalar_lea.vmem [#allocation4], %s158
          %161 = vsyncadd %s156, 0
          %s162 = sadd.s32 %s35, %s34
          %s163 = smul.addr %s33, 4
          %s164 = sadd.s32 %s162, %s163
          %s165 = smul.addr %s164, 8
          %s166 = scalar_lea.hbm %s1, %s165
          %s168 = sshll.u32 %s166, 4
          %s169 = int_to_ptr.hbm [resolvable:$true] %s168
          %s170 = sshll.u32 %s159, 4
          %s171 = int_to_ptr.vmem [resolvable:$true] %s170
          %173 = dma.hbm_to_vmem [thread:$0]  %s169, 128, %s171, %s156
        $region20: #{tpu_custom_call.1} parent=15 // pred_fallthru
          _
        // Predicated region
        $region21: #{tpu_custom_call.1} parent=15 // pred_check
          %p174 = pneg %p97
        $region22: #{tpu_custom_call.1} parent=15 // pred_check_branch
          %176 = sbr.rel (%p174) target = $region24
        $region23: #{tpu_custom_call.1} parent=15 // pred_region
          %s177 = sand.u32 %s87, 1
          %s178 = scalar_lea.sflag [#allocation8], %s177
          %s179 = sand.u32 %s87, 1
          %s180 = smul.addr %s179, 8
          %s181 = scalar_lea.vmem [#allocation7], %s180
          %183 = vsyncadd %s178, 0
          %s184 = smul.addr %s33, 4
          %s185 = sadd.s32 %s34, %s184
          %s186 = smul.addr %s185, 8
          %s187 = scalar_lea.hbm %s2, %s186
          %s189 = sshll.u32 %s187, 4
          %s190 = int_to_ptr.hbm [resolvable:$true] %s189
          %s191 = sshll.u32 %s181, 4
          %s192 = int_to_ptr.vmem [resolvable:$true] %s191
          %194 = dma.hbm_to_vmem [thread:$0]  %s190, 128, %s192, %s178
        $region24: #{tpu_custom_call.1} parent=15 // pred_fallthru
          _
      $region16: #{tpu_custom_call.1} parent=5 // pred_fallthru
        _
      %p195 = scmp.le.s32.totalorder 1, %s26
      %p196 = scmp.lt.s32.totalorder %s26, 9
      %p197 = pnand %p195, %p196
      %p198 = pneg %p197
      // Predicated region
      $region25: #{tpu_custom_call.1} parent=5 // pred_check
        _
      $region26: #{tpu_custom_call.1} parent=5 // pred_check_branch
        %200 = sbr.rel (%p197) target = $region28
      $region27: #{tpu_custom_call.1} parent=5 // pred_region
        %s201 = ssub.s32 %s26, 1
        %s202 = sand.u32 %s62, 1
        %s203 = scalar_lea.sflag [#allocation5], %s202
        %s204 = sand.u32 %s62, 1
        %s205 = smul.addr %s204, 8
        %s206 = scalar_lea.vmem [#allocation4], %s205
        // Predicated region
        $region29: #{tpu_custom_call.1} parent=27 // pred_check
          %p207 = pneg %p75
        $region30: #{tpu_custom_call.1} parent=27 // pred_check_branch
          %209 = sbr.rel (%p207) target = $region32
        $region31: #{tpu_custom_call.1} parent=27 // pred_region
          %211 = dma.done %s203, 128
        $region32: #{tpu_custom_call.1} parent=27 // pred_fallthru
          _
        %s212 = sand.u32 %s90, 1
        %s213 = scalar_lea.sflag [#allocation8], %s212
        %s214 = sand.u32 %s90, 1
        %s215 = smul.addr %s214, 8
        %s216 = scalar_lea.vmem [#allocation7], %s215
        // Predicated region
        $region33: #{tpu_custom_call.1} parent=27 // pred_check
          %p217 = pneg %p103
        $region34: #{tpu_custom_call.1} parent=27 // pred_check_branch
          %219 = sbr.rel (%p217) target = $region36
        $region35: #{tpu_custom_call.1} parent=27 // pred_region
          %221 = dma.done %s213, 128
        $region36: #{tpu_custom_call.1} parent=27 // pred_fallthru
          _
        %s222 = sand.u32 %s62, 1
        %s223 = scalar_lea.sflag [#allocation5], %s222
        %s224 = sand.u32 %s62, 1
        %s225 = smul.addr %s224, 8
        %s226 = scalar_lea.vmem [#allocation4], %s225
        %p227 = pneg %p75
        %p228 = pneg %p72
        %s229 = sand.u32 %s90, 1
        %s230 = scalar_lea.sflag [#allocation8], %s229
        %s231 = sand.u32 %s90, 1
        %s232 = smul.addr %s231, 8
        %s233 = scalar_lea.vmem [#allocation7], %s232
        %p234 = pneg %p103
        %p235 = pneg %p100
        %p236 = pneg %p133
        %p237 = pneg %p130
        %s238 = sand.u32 %s120, 1
        %s239 = scalar_lea.sflag [#allocation6], %s238
        %s240 = sand.u32 %s120, 1
        %s241 = smul.addr %s240, 8
        %s242 = scalar_lea.vmem [#allocation9], %s241
        %v243 = vld [vmem:[%s206] sm:$0xff]
        %s244 = sld [smem:[#allocation3 + %s37]]
        %v245 = vstv %s244
        %v246 = vmul.f32 %v243, %v245
        %v247 = vld [vmem:[%s216] sm:$0xff]
        %vm248 = vcmask 64512
        %v250 = vsel %vm248, %v246, 0
        %v253 = vsel %vm248, %v247, 0
        %255 = vmatpush.xpose.msra.mxu0 0.0
        %256 = vmatpush.xpose.msra.mxu0 0.0
        %257 = vmatpush.xpose.msra.mxu0 0.0
        %258 = vmatpush.xpose.msra.mxu0 0.0
        %259 = vmatpush.xpose.msra.mxu0 0.0
        %260 = vmatpush.xpose.msra.mxu0 0.0
        %261 = vmatpush.xpose.msra.mxu0 0.0
        %262 = vmatpush.xpose.msra.mxu0 0.0
        %263 = vmatpush.xpose.msra.mxu0 0.0
        %264 = vmatpush.xpose.msra.mxu0 0.0
        %265 = vmatpush.xpose.msra.mxu0 0.0
        %266 = vmatpush.xpose.msra.mxu0 0.0
        %267 = vmatpush.xpose.msra.mxu0 0.0
        %268 = vmatpush.xpose.msra.mxu0 0.0
        %269 = vmatpush.xpose.msra.mxu0 0.0
        %v270 = vand.u32 %v253, 4294901760
        %271 = vmatpush.xpose.msra.mxu0 %v270
        %v272 = vand.u32 %v250, 4294901760
        %v273 = vsub.f32 %v250, %v272
        %v274 = vand.u32 %v273, 4294901760
        %v275 = vsub.f32 %v273, %v274
        %v276 = vand.u32 %v275, 4294901760
        %277 = vmatmul.f32.gmra.mxu0 %v276
        %v278 = vpop.f32.mrf.mxu0
        %v279 = vadd.f32 0.0, %v278
        %280 = vdwg.mxu0
        %281 = vmatpush.xpose.msra.mxu0 0.0
        %282 = vmatpush.xpose.msra.mxu0 0.0
        %283 = vmatpush.xpose.msra.mxu0 0.0
        %284 = vmatpush.xpose.msra.mxu0 0.0
        %285 = vmatpush.xpose.msra.mxu0 0.0
        %286 = vmatpush.xpose.msra.mxu0 0.0
        %287 = vmatpush.xpose.msra.mxu0 0.0
        %288 = vmatpush.xpose.msra.mxu0 0.0
        %289 = vmatpush.xpose.msra.mxu0 0.0
        %290 = vmatpush.xpose.msra.mxu0 0.0
        %291 = vmatpush.xpose.msra.mxu0 0.0
        %292 = vmatpush.xpose.msra.mxu0 0.0
        %293 = vmatpush.xpose.msra.mxu0 0.0
        %294 = vmatpush.xpose.msra.mxu0 0.0
        %295 = vmatpush.xpose.msra.mxu0 0.0
        %v296 = vand.u32 %v253, 4294901760
        %v297 = vsub.f32 %v253, %v296
        %v298 = vand.u32 %v297, 4294901760
        %v299 = vsub.f32 %v297, %v298
        %v300 = vand.u32 %v299, 4294901760
        %301 = vmatpush.xpose.msra.mxu0 %v300
        %v302 = vand.u32 %v250, 4294901760
        %303 = vmatmul.f32.gmra.mxu0 %v302
        %v304 = vpop.f32.mrf.mxu0
        %v305 = vadd.f32 %v279, %v304
        %306 = vdwg.mxu0
        %307 = vmatpush.xpose.msra.mxu0 0.0
        %308 = vmatpush.xpose.msra.mxu0 0.0
        %309 = vmatpush.xpose.msra.mxu0 0.0
        %310 = vmatpush.xpose.msra.mxu0 0.0
        %311 = vmatpush.xpose.msra.mxu0 0.0
        %312 = vmatpush.xpose.msra.mxu0 0.0
        %313 = vmatpush.xpose.msra.mxu0 0.0
        %314 = vmatpush.xpose.msra.mxu0 0.0
        %315 = vmatpush.xpose.msra.mxu0 0.0
        %316 = vmatpush.xpose.msra.mxu0 0.0
        %317 = vmatpush.xpose.msra.mxu0 0.0
        %318 = vmatpush.xpose.msra.mxu0 0.0
        %319 = vmatpush.xpose.msra.mxu0 0.0
        %320 = vmatpush.xpose.msra.mxu0 0.0
        %321 = vmatpush.xpose.msra.mxu0 0.0
        %v322 = vand.u32 %v253, 4294901760
        %v323 = vsub.f32 %v253, %v322
        %324 = vmatpush.xpose.msra.mxu0 %v323
        %v325 = vand.u32 %v250, 4294901760
        %v326 = vsub.f32 %v250, %v325
        %327 = vmatmul.f32.gmra.mxu0 %v326
        %v328 = vpop.f32.mrf.mxu0
        %v329 = vadd.f32 %v305, %v328
        %330 = vdwg.mxu0
        %331 = vmatpush.xpose.msra.mxu0 0.0
        %332 = vmatpush.xpose.msra.mxu0 0.0
        %333 = vmatpush.xpose.msra.mxu0 0.0
        %334 = vmatpush.xpose.msra.mxu0 0.0
        %335 = vmatpush.xpose.msra.mxu0 0.0
        %336 = vmatpush.xpose.msra.mxu0 0.0
        %337 = vmatpush.xpose.msra.mxu0 0.0
        %338 = vmatpush.xpose.msra.mxu0 0.0
        %339 = vmatpush.xpose.msra.mxu0 0.0
        %340 = vmatpush.xpose.msra.mxu0 0.0
        %341 = vmatpush.xpose.msra.mxu0 0.0
        %342 = vmatpush.xpose.msra.mxu0 0.0
        %343 = vmatpush.xpose.msra.mxu0 0.0
        %344 = vmatpush.xpose.msra.mxu0 0.0
        %345 = vmatpush.xpose.msra.mxu0 0.0
        %v346 = vand.u32 %v253, 4294901760
        %347 = vmatpush.xpose.msra.mxu0 %v346
        %v348 = vand.u32 %v250, 4294901760
        %v349 = vsub.f32 %v250, %v348
        %v350 = vand.u32 %v349, 4294901760
        %351 = vmatmul.f32.gmra.mxu0 %v350
        %v352 = vpop.f32.mrf.mxu0
        %v353 = vadd.f32 %v329, %v352
        %354 = vdwg.mxu0
        %355 = vmatpush.xpose.msra.mxu0 0.0
        %356 = vmatpush.xpose.msra.mxu0 0.0
        %357 = vmatpush.xpose.msra.mxu0 0.0
        %358 = vmatpush.xpose.msra.mxu0 0.0
        %359 = vmatpush.xpose.msra.mxu0 0.0
        %360 = vmatpush.xpose.msra.mxu0 0.0
        %361 = vmatpush.xpose.msra.mxu0 0.0
        %362 = vmatpush.xpose.msra.mxu0 0.0
        %363 = vmatpush.xpose.msra.mxu0 0.0
        %364 = vmatpush.xpose.msra.mxu0 0.0
        %365 = vmatpush.xpose.msra.mxu0 0.0
        %366 = vmatpush.xpose.msra.mxu0 0.0
        %367 = vmatpush.xpose.msra.mxu0 0.0
        %368 = vmatpush.xpose.msra.mxu0 0.0
        %369 = vmatpush.xpose.msra.mxu0 0.0
        %v370 = vand.u32 %v253, 4294901760
        %v371 = vsub.f32 %v253, %v370
        %v372 = vand.u32 %v371, 4294901760
        %373 = vmatpush.xpose.msra.mxu0 %v372
        %v374 = vand.u32 %v250, 4294901760
        %375 = vmatmul.f32.gmra.mxu0 %v374
        %v376 = vpop.f32.mrf.mxu0
        %v377 = vadd.f32 %v353, %v376
        %378 = vdwg.mxu0
        %379 = vmatpush.xpose.msra.mxu0 0.0
        %380 = vmatpush.xpose.msra.mxu0 0.0
        %381 = vmatpush.xpose.msra.mxu0 0.0
        %382 = vmatpush.xpose.msra.mxu0 0.0
        %383 = vmatpush.xpose.msra.mxu0 0.0
        %384 = vmatpush.xpose.msra.mxu0 0.0
        %385 = vmatpush.xpose.msra.mxu0 0.0
        %386 = vmatpush.xpose.msra.mxu0 0.0
        %387 = vmatpush.xpose.msra.mxu0 0.0
        %388 = vmatpush.xpose.msra.mxu0 0.0
        %389 = vmatpush.xpose.msra.mxu0 0.0
        %390 = vmatpush.xpose.msra.mxu0 0.0
        %391 = vmatpush.xpose.msra.mxu0 0.0
        %392 = vmatpush.xpose.msra.mxu0 0.0
        %393 = vmatpush.xpose.msra.mxu0 0.0
        %v394 = vand.u32 %v253, 4294901760
        %395 = vmatpush.xpose.msra.mxu0 %v394
        %v396 = vand.u32 %v250, 4294901760
        %397 = vmatmul.f32.gmra.mxu0 %v396
        %v398 = vpop.f32.mrf.mxu0
        %v399 = vadd.f32 %v377, %v398
        %400 = vdwg.mxu0
        %401 = vst.msk [vmem:[%s242] sm:$0xff] %vm248, %v399
        %s402 = sand.u32 %s120, 1
        %s403 = scalar_lea.sflag [#allocation6], %s402
        %s404 = sand.u32 %s120, 1
        %s405 = smul.addr %s404, 8
        %s406 = scalar_lea.vmem [#allocation9], %s405
        // Predicated region
        $region37: #{tpu_custom_call.1} parent=27 // pred_check
          %p407 = pneg %p130
        $region38: #{tpu_custom_call.1} parent=27 // pred_check_branch
          %409 = sbr.rel (%p407) target = $region40
        $region39: #{tpu_custom_call.1} parent=27 // pred_region
          %411 = vsyncadd %s403, 0
          %s412 = sadd.s32 %s38, %s37
          %s413 = smul.addr %s36, 4
          %s414 = sadd.s32 %s412, %s413
          %s415 = smul.addr %s414, 8
          %s416 = scalar_lea.hbm %s3, %s415
          %s418 = sshll.u32 %s406, 4
          %s419 = int_to_ptr.vmem [resolvable:$true] %s418
          %s420 = sshll.u32 %s416, 4
          %s421 = int_to_ptr.hbm [resolvable:$true] %s420
          %423 = dma.vmem_to_hbm [thread:$0]  %s419, 128, %s421, %s403
        $region40: #{tpu_custom_call.1} parent=27 // pred_fallthru
          _
      $region28: #{tpu_custom_call.1} parent=5 // pred_fallthru
        _
      %p424 = scmp.le.s32.totalorder 2, %s26
      // Predicated region
      $region41: #{tpu_custom_call.1} parent=5 // pred_check
        %p425 = pneg %p424
      $region42: #{tpu_custom_call.1} parent=5 // pred_check_branch
        %427 = sbr.rel (%p425) target = $region44
      $region43: #{tpu_custom_call.1} parent=5 // pred_region
        %s428 = ssub.s32 %s26, 2
        // Predicated region
        $region45: #{tpu_custom_call.1} parent=43 // pred_check
          %p429 = pneg %p136
        $region46: #{tpu_custom_call.1} parent=43 // pred_check_branch
          %431 = sbr.rel (%p429) target = $region48
        $region47: #{tpu_custom_call.1} parent=43 // pred_region
          %s432 = sand.u32 %s121, 1
          %s433 = scalar_lea.sflag [#allocation6], %s432
          %s434 = sand.u32 %s121, 1
          %s435 = smul.addr %s434, 8
          %s436 = scalar_lea.vmem [#allocation9], %s435
          %438 = dma.done %s433, 128
        $region48: #{tpu_custom_call.1} parent=43 // pred_fallthru
          _
      $region44: #{tpu_custom_call.1} parent=5 // pred_fallthru
        _
    $region6: #{tpu_custom_call.1} parent=1 // loop_footer
      %s30 = sadd.s32 1, %s26
    $region7: #{tpu_custom_call.1} parent=1 // loop_footer_branch
      %25 = sbr.rel target = $region3
    $region8: #{tpu_custom_call.1} parent=1 // loop_exit
      _
    %439 = vsyncpa [#allocation5], 1
    %s440 = scalar_lea.sflag [#allocation5], 1
    %441 = vsyncpa %s440, 1
    %442 = vsyncpa [#allocation8], 1
    %s443 = scalar_lea.sflag [#allocation8], 1
    %444 = vsyncpa %s443, 1
    %445 = vsyncpa [#allocation6], 1
    %s446 = scalar_lea.sflag [#allocation6], 1
    %447 = vsyncpa %s446, 1

</llo_original>
